<compile_context>
chip_gen: v7x
topology: tpu7x:2x2x1
jax: 0.10.0
libtpu: 0.0.40
codegen_flags: <defaults>
</compile_context>

<pallas_src>
import jax
import jax.numpy as jnp
from jax.experimental import pallas as pl
from jax.experimental.pallas import tpu as pltpu


def make_moe_kernel(num_experts: int, num_layers: int, first_hidden: int,
                    compute_dtype=jnp.bfloat16):
    """Ref order: x, W_cat, b_cat, W_blk_1..L-2, b_wide_1..L-2, G_expand, W_stack, b_stack, out."""
    E = num_experts
    L = num_layers
    num_blkdiag = L - 2                      # middle layers fused block-diagonally
    ED1 = E * first_hidden

    def kernel(*refs):
        x_ref = refs[0]
        wcat_ref, bcat_ref = refs[1], refs[2]
        wblk_refs = refs[3:3 + num_blkdiag]
        bwide_refs = refs[3 + num_blkdiag:3 + 2 * num_blkdiag]
        gexp_ref = refs[3 + 2 * num_blkdiag]
        wstack_ref = refs[4 + 2 * num_blkdiag]
        bstack_ref = refs[5 + 2 * num_blkdiag]
        o_ref = refs[6 + 2 * num_blkdiag]

        # Fused first layer of every expert + the gate logits: one wide bf16 MXU matmul
        # (f32 accumulation); biases added once in f32 on the VPU.
        y = jnp.dot(x_ref[...], wcat_ref[...],
                    preferred_element_type=jnp.float32) + bcat_ref[...]      # [TB, E*D1+E]

        # Gate softmax over experts (f32; divide goes to the EUP via approx reciprocal,
        # so gates normalize only to ~1e-3 relative -- fine at bf16-level tolerance).
        logits = y[:, ED1:ED1 + E]                                           # [TB, E]
        m = jnp.max(logits, axis=1, keepdims=True)
        p = jnp.exp(logits - m)
        gates = p * pl.reciprocal(jnp.sum(p, axis=1, keepdims=True), approx=True)
        gates_lp = gates.astype(compute_dtype)

        # Expert stack stays wide / lane-dense as [TB, E*D_l]; ReLU after every layer
        # except the last (f32 elementwise — safe on v5e's VPU).
        h = jnp.maximum(y[:, :ED1], 0.0)
        for l in range(num_blkdiag):
            h = jnp.dot(h.astype(compute_dtype), wblk_refs[l][...],
                        preferred_element_type=jnp.float32) + bwide_refs[l][...]
            h = jnp.maximum(h, 0.0)

        # Gate folded into the last layer's input:
        #   out = sum_e g_e*(h_e @ W_e + b_e) = (gate_exp * h) @ W_stack + gates @ b_stack
        # gate_exp broadcasts gate e over its expert's D_{L-1} lanes via a 0/1 bf16
        # matmul (exact); both epilogue matmuls are single-pass bf16 on the MXU.
        gate_exp = jnp.dot(gates_lp, gexp_ref[...],
                           preferred_element_type=jnp.float32)               # [TB, E*D_{L-1}]
        h_gated = (gate_exp * h).astype(compute_dtype)
        out = (jnp.dot(h_gated, wstack_ref[...], preferred_element_type=jnp.float32)
               + jnp.dot(gates_lp, bstack_ref[...], preferred_element_type=jnp.float32))
        # Lane-dense [TB, DL_pad=128] store (weights zero-padded); wrapper slices to DL.
        o_ref[...] = out.astype(o_ref.dtype)

    return kernel


def _block_diag(w):
    """Stacked expert weights [E, Din, Dout] -> block-diagonal [E*Din, E*Dout].

    NOTE: cost scales as E^2 * Din * Dout (E x stored/DMAed/multiplied zeros).  Fine at
    E=4, D<=64.  TODO(synk): past ~E>=8 or D>=512 switch these middle layers to
    per-expert grouped matmuls (scalar-prefetch over experts) instead of block-diag.
    """
    E, Din, Dout = w.shape
    eye = jnp.eye(E, dtype=w.dtype)
    return jnp.einsum('ef,eij->eifj', eye, w).reshape(E * Din, E * Dout)


def moe_forward(x, gate_w, gate_b, expert_ws, expert_bs, *,
                block_b=512, compute_dtype=jnp.bfloat16):
    """x: [B, D0]; expert_ws[l]: [E, D_l, D_{l+1}] ((in, out) layout);
    expert_bs[l]: [E, 1, D_{l+1}]; gate_w: [D0, E]; gate_b: [1, E]."""
    B, D0 = x.shape
    L = len(expert_ws)
    E = expert_ws[0].shape[0]
    D1 = expert_ws[0].shape[-1]
    DL = expert_ws[-1].shape[-1]
    D_last_in = expert_ws[-1].shape[1]
    if L < 2:
        # TODO(synk): single-Linear experts (len(hidden_size_list)==2) would need the gate
        # folded onto a lane-replicated copy of x; not wired up here.
        raise NotImplementedError("moe_forward requires >= 2 Linear layers per expert")

    # ---- layer 0 of every expert + the gate fused into one weight slab ----
    w0_wide = jnp.transpose(expert_ws[0], (1, 0, 2)).reshape(D0, E * D1)
    w_cat = jnp.concatenate([w0_wide, gate_w], axis=1).astype(compute_dtype)   # [D0, E*D1+E]
    b_cat = jnp.concatenate([expert_bs[0].reshape(1, E * D1), gate_b],
                            axis=1).astype(jnp.float32)                        # [1, E*D1+E]

    # ---- middle layers 1..L-2: all experts fused into one block-diag matmul each ----
    w_blks = [_block_diag(expert_ws[l]).astype(compute_dtype) for l in range(1, L - 1)]
    b_wides = [expert_bs[l].reshape(1, -1).astype(jnp.float32) for l in range(1, L - 1)]

    # ---- last layer with the gate folded into its input (lane-dense padded output) ----
    DL_pad = max(128, ((DL + 127) // 128) * 128)
    g_expand = jnp.repeat(jnp.eye(E, dtype=compute_dtype), D_last_in, axis=1)  # [E, E*D_{L-1}]
    w_stack = jnp.pad(expert_ws[-1].reshape(E * D_last_in, DL),
                      ((0, 0), (0, DL_pad - DL))).astype(compute_dtype)        # [E*D_{L-1}, DL_pad]
    b_stack = jnp.pad(expert_bs[-1].reshape(E, DL),
                      ((0, 0), (0, DL_pad - DL))).astype(compute_dtype)        # [E, DL_pad]

    x_lp = x.astype(compute_dtype)

    # Batch tile: large (amortizes per-step overhead + K=32 first-matmul weight loads),
    # but keep >= 2 grid steps when B allows so the "parallel" batch axis spans both of
    # v7x's TensorCores.  Tile rows stay a multiple of 8 (sublane constraint).  If B is
    # not a multiple of tb, the ragged last block reads junk rows through exp/softmax —
    # safe only because Pallas masks the out-of-bounds write-back (do not move the store
    # into an accumulating scratch without re-masking).
    tb = min(block_b, B)
    if B > 8 and pl.cdiv(B, tb) < 2:
        tb = max(8, ((pl.cdiv(B, 2) + 7) // 8) * 8)
    grid = (pl.cdiv(B, tb),)

    args = [x_lp, w_cat, b_cat] + w_blks + b_wides + [g_expand, w_stack, b_stack]

    # Weights/biases/expander: whole-array blocks, constant index map, single VMEM buffer
    # (Buffered(1)) -> loaded once, resident across every batch step, no wasted 2nd buffer.
    def resident(a):
        nd = a.ndim
        return pl.BlockSpec(a.shape, lambda i, _nd=nd: (0,) * _nd,
                            pipeline_mode=pl.Buffered(1))

    in_specs = ([pl.BlockSpec((tb, D0), lambda i: (i, 0))]
                + [resident(a) for a in args[1:]])

    kernel = make_moe_kernel(E, L, D1, compute_dtype)

    out = pl.pallas_call(
        kernel,
        out_shape=jax.ShapeDtypeStruct((B, DL_pad), jnp.float32),
        grid=grid,
        in_specs=in_specs,
        out_specs=pl.BlockSpec((tb, DL_pad), lambda i: (i, 0)),
        # Resident operands are <1 MiB here; when scaling E/D, budget against v7x's
        # 64 MiB physical / 32 MiB scoped VMEM (raise vmem_limit_bytes if needed).
        compiler_params=pltpu.CompilerParams(dimension_semantics=("parallel",)),
    )(*args)
    return out[:, :DL]


def moe_reference(x, gate_w, gate_b, expert_ws, expert_bs):
    """Pure-JAX f32 reference mirroring the PyTorch MoE.forward."""
    E = expert_ws[0].shape[0]
    L = len(expert_ws)
    gates = jax.nn.softmax(x @ gate_w + gate_b, axis=1)                    # [B, E]
    outs = []
    for e in range(E):
        h = x
        for l in range(L):
            h = h @ expert_ws[l][e] + expert_bs[l][e][0]
            if l < L - 1:
                h = jnp.maximum(h, 0.0)
        outs.append(h)
    expert_outputs = jnp.stack(outs, axis=1)                               # [B, E, DL]
    return jnp.sum(gates[..., None] * expert_outputs, axis=1)


if __name__ == "__main__":
    def run_case(B, hidden_size_list, num_experts):
        num_layers = len(hidden_size_list) - 1
        key = jax.random.PRNGKey(0)
        keys = jax.random.split(key, 2 + 2 * num_layers)

        x = jax.random.normal(keys[0], (B, hidden_size_list[0]), dtype=jnp.float32)
        # PyTorch Linear stores (out, in); we keep the transposed (in, out) layout so the
        # kernel does plain x @ W.
        gate_w = 0.1 * jax.random.normal(keys[1], (hidden_size_list[0], num_experts),
                                         dtype=jnp.float32)
        gate_b = 0.01 * jnp.arange(num_experts, dtype=jnp.float32).reshape(1, num_experts)

        expert_ws, expert_bs = [], []
        for l in range(num_layers):
            d_in, d_out = hidden_size_list[l], hidden_size_list[l + 1]
            expert_ws.append(0.1 * jax.random.normal(
                keys[2 + 2 * l], (num_experts, d_in, d_out), dtype=jnp.float32))
            expert_bs.append(0.1 * jax.random.normal(
                keys[3 + 2 * l], (num_experts, 1, d_out), dtype=jnp.float32))

        out = moe_forward(x, gate_w, gate_b, expert_ws, expert_bs)
        out = jax.block_until_ready(out)
        ref = moe_reference(x, gate_w, gate_b, expert_ws, expert_bs)
        assert out.shape == (B, hidden_size_list[-1])
        # bf16 MXU operands (f32 accumulation) + approx-reciprocal softmax -> compare
        # against the pure-f32 reference at bf16-level tolerance.
        max_diff = float(jnp.max(jnp.abs(out - ref)))
        assert jnp.allclose(out, ref, atol=3e-2, rtol=3e-2), (
            f"Pallas MoE mismatch (hidden={hidden_size_list}): max abs diff = {max_diff}")

    # 2 Linear layers per expert: gate-folded last layer, no block-diag middle layers.
    run_case(256, [32, 64, 16], 4)
    # 3 Linear layers per expert: exercises the block-diagonal middle-layer path.
    run_case(192, [32, 64, 64, 16], 4)
    print("KERNEL_OK")
</pallas_src>

<mosaic_0001>
module attributes {stable_mosaic.version = 11 : i64} {
  func.func @kernel(%arg0: i32, %arg1: memref<128x32xbf16, #tpu.memory_space<vmem>>, %arg2: memref<32x260xbf16, #tpu.memory_space<vmem>>, %arg3: memref<1x260xf32, #tpu.memory_space<vmem>>, %arg4: memref<4x256xbf16, #tpu.memory_space<vmem>>, %arg5: memref<256x128xbf16, #tpu.memory_space<vmem>>, %arg6: memref<4x128xbf16, #tpu.memory_space<vmem>>, %arg7: memref<128x128xf32, #tpu.memory_space<vmem>>) attributes {dimension_semantics = [#tpu.dimension_semantics<parallel>], iteration_bounds = array<i64: 2>, scalar_prefetch = 0 : i64, scratch_operands = 0 : i64, tpu.core_type = #tpu.core_type<tc>, window_params = [{transform_indices = @transform_0, window_bounds = array<i64: 128, 32>}, {pipeline_mode = #tpu.pipeline_mode<synchronous>, transform_indices = @transform_1, window_bounds = array<i64: 32, 260>}, {pipeline_mode = #tpu.pipeline_mode<synchronous>, transform_indices = @transform_2, window_bounds = array<i64: 1, 260>}, {pipeline_mode = #tpu.pipeline_mode<synchronous>, transform_indices = @transform_3, window_bounds = array<i64: 4, 256>}, {pipeline_mode = #tpu.pipeline_mode<synchronous>, transform_indices = @transform_4, window_bounds = array<i64: 256, 128>}, {pipeline_mode = #tpu.pipeline_mode<synchronous>, transform_indices = @transform_5, window_bounds = array<i64: 4, 128>}, {transform_indices = @transform_6, window_bounds = array<i64: 128, 128>}]} {
    %c0 = arith.constant 0 : index
    %c0_0 = arith.constant 0 : index
    %0 = vector.load %arg1[%c0, %c0_0] : memref<128x32xbf16, #tpu.memory_space<vmem>>, vector<128x32xbf16>
    %c0_1 = arith.constant 0 : index
    %c0_2 = arith.constant 0 : index
    %1 = vector.load %arg2[%c0_1, %c0_2] : memref<32x260xbf16, #tpu.memory_space<vmem>>, vector<32x260xbf16>
    %cst = arith.constant dense<0.000000e+00> : vector<128x260xf32>
    %2 = tpu.matmul %0, %1, %cst {dimension_numbers = #tpu.dot_dimension_numbers<[1], [0], [0], [1], [0, 0, 1, 1], [], []>} : vector<128x32xbf16>, vector<32x260xbf16>, vector<128x260xf32> -> vector<128x260xf32>
    %c0_3 = arith.constant 0 : index
    %c0_4 = arith.constant 0 : index
    %3 = vector.load %arg3[%c0_3, %c0_4] : memref<1x260xf32, #tpu.memory_space<vmem>>, vector<1x260xf32>
    %4 = vector.broadcast %3 : vector<1x260xf32> to vector<128x260xf32>
    %5 = arith.addf %2, %4 : vector<128x260xf32>
    %6 = vector.extract_strided_slice %5 {offsets = [0, 256], sizes = [128, 4], strides = [1, 1]} : vector<128x260xf32> to vector<128x4xf32>
    %cst_5 = arith.constant dense<0xFF800000> : vector<128xf32>
    %7 = vector.multi_reduction <maximumf>, %6, %cst_5 [1] : vector<128x4xf32> to vector<128xf32>
    %8 = vector.shape_cast %7 : vector<128xf32> to vector<128x1xf32>
    %9 = vector.broadcast %8 : vector<128x1xf32> to vector<128x4xf32>
    %10 = arith.subf %6, %9 : vector<128x4xf32>
    %11 = math.exp %10 : vector<128x4xf32>
    %cst_6 = arith.constant dense<0.000000e+00> : vector<128xf32>
    %12 = vector.multi_reduction <add>, %11, %cst_6 [1] : vector<128x4xf32> to vector<128xf32>
    %13 = vector.shape_cast %12 : vector<128xf32> to vector<128x1xf32>
    %14 = tpu.reciprocal %13 {approx = true} : vector<128x1xf32> -> vector<128x1xf32>
    %15 = vector.broadcast %14 : vector<128x1xf32> to vector<128x4xf32>
    %16 = arith.mulf %11, %15 : vector<128x4xf32>
    %17 = arith.truncf %16 : vector<128x4xf32> to vector<128x4xbf16>
    %18 = vector.extract_strided_slice %5 {offsets = [0, 0], sizes = [128, 256], strides = [1, 1]} : vector<128x260xf32> to vector<128x256xf32>
    %cst_7 = arith.constant 0.000000e+00 : f32
    %19 = vector.broadcast %cst_7 : f32 to vector<128x256xf32>
    %20 = arith.maximumf %18, %19 : vector<128x256xf32>
    %c0_8 = arith.constant 0 : index
    %c0_9 = arith.constant 0 : index
    %21 = vector.load %arg4[%c0_8, %c0_9] : memref<4x256xbf16, #tpu.memory_space<vmem>>, vector<4x256xbf16>
    %cst_10 = arith.constant dense<0.000000e+00> : vector<128x256xf32>
    %22 = tpu.matmul %17, %21, %cst_10 {dimension_numbers = #tpu.dot_dimension_numbers<[1], [0], [0], [1], [0, 0, 1, 1], [], []>} : vector<128x4xbf16>, vector<4x256xbf16>, vector<128x256xf32> -> vector<128x256xf32>
    %23 = arith.mulf %22, %20 : vector<128x256xf32>
    %24 = arith.truncf %23 : vector<128x256xf32> to vector<128x256xbf16>
    %c0_11 = arith.constant 0 : index
    %c0_12 = arith.constant 0 : index
    %25 = vector.load %arg5[%c0_11, %c0_12] : memref<256x128xbf16, #tpu.memory_space<vmem>>, vector<256x128xbf16>
    %cst_13 = arith.constant dense<0.000000e+00> : vector<128x128xf32>
    %26 = tpu.matmul %24, %25, %cst_13 {dimension_numbers = #tpu.dot_dimension_numbers<[1], [0], [0], [1], [0, 0, 1, 1], [], []>} : vector<128x256xbf16>, vector<256x128xbf16>, vector<128x128xf32> -> vector<128x128xf32>
    %c0_14 = arith.constant 0 : index
    %c0_15 = arith.constant 0 : index
    %27 = vector.load %arg6[%c0_14, %c0_15] : memref<4x128xbf16, #tpu.memory_space<vmem>>, vector<4x128xbf16>
    %cst_16 = arith.constant dense<0.000000e+00> : vector<128x128xf32>
    %28 = tpu.matmul %17, %27, %cst_16 {dimension_numbers = #tpu.dot_dimension_numbers<[1], [0], [0], [1], [0, 0, 1, 1], [], []>} : vector<128x4xbf16>, vector<4x128xbf16>, vector<128x128xf32> -> vector<128x128xf32>
    %29 = arith.addf %26, %28 : vector<128x128xf32>
    %c0_17 = arith.constant 0 : index
    %c0_18 = arith.constant 0 : index
    %30 = vector.load %arg7[%c0_17, %c0_18] : memref<128x128xf32, #tpu.memory_space<vmem>>, vector<128x128xf32>
    tpu.vector_store %arg7[%c0_17, %c0_18], %29 {strides = array<i32>} : memref<128x128xf32, #tpu.memory_space<vmem>>, vector<128x128xf32>,
    return
  }
  func.func @transform_0(%arg0: i32) -> (i32, i32) {
    %c0_i32 = arith.constant 0 : i32
    %c0_i32_0 = arith.constant 0 : i32
    return %arg0, %c0_i32 : i32, i32
  }
  func.func @transform_1(%arg0: i32) -> (i32, i32) {
    %c0_i32 = arith.constant 0 : i32
    %c0_i32_0 = arith.constant 0 : i32
    %c0_i32_1 = arith.constant 0 : i32
    return %c0_i32, %c0_i32_0 : i32, i32
  }
  func.func @transform_2(%arg0: i32) -> (i32, i32) {
    %c0_i32 = arith.constant 0 : i32
    %c0_i32_0 = arith.constant 0 : i32
    %c0_i32_1 = arith.constant 0 : i32
    return %c0_i32, %c0_i32_0 : i32, i32
  }
  func.func @transform_3(%arg0: i32) -> (i32, i32) {
    %c0_i32 = arith.constant 0 : i32
    %c0_i32_0 = arith.constant 0 : i32
    %c0_i32_1 = arith.constant 0 : i32
    return %c0_i32, %c0_i32_0 : i32, i32
  }
  func.func @transform_4(%arg0: i32) -> (i32, i32) {
    %c0_i32 = arith.constant 0 : i32
    %c0_i32_0 = arith.constant 0 : i32
    %c0_i32_1 = arith.constant 0 : i32
    return %c0_i32, %c0_i32_0 : i32, i32
  }
  func.func @transform_5(%arg0: i32) -> (i32, i32) {
    %c0_i32 = arith.constant 0 : i32
    %c0_i32_0 = arith.constant 0 : i32
    %c0_i32_1 = arith.constant 0 : i32
    return %c0_i32, %c0_i32_0 : i32, i32
  }
  func.func @transform_6(%arg0: i32) -> (i32, i32) {
    %c0_i32 = arith.constant 0 : i32
    %c0_i32_0 = arith.constant 0 : i32
    return %arg0, %c0_i32 : i32, i32
  }
}

</mosaic_0001>

<llo_original>
// kernel: tpu_custom_call.1
$region0: #{tpu_custom_call.1}
  #allocation0 [shape = 'u32[]', space=smem, size = 0x4, offset = 0x4, fixed_abs, tag = 'smem constant byte address 0x4 - core index']
  #allocation1 [shape = 'u32[144,128]{1,0:T(1,128)}', space=vmem, size = 0x12000, scoped, tag = 'internal scratch']
  %s0 = inlined_call_operand.vmem [shape: bf16[256,32], index: 0, kind: input, shape index: {}]
  %s1 = inlined_call_operand.hbm [shape: bf16[32,260], index: 1, kind: input, shape index: {}]
  %s2 = inlined_call_operand.vmem [shape: f32[1,260], index: 2, kind: input, shape index: {}]
  %s3 = inlined_call_operand.vmem [shape: bf16[4,256], index: 3, kind: input, shape index: {}]
  %s4 = inlined_call_operand.vmem [shape: bf16[256,128], index: 4, kind: input, shape index: {}]
  %s5 = inlined_call_operand.vmem [shape: bf16[4,128], index: 5, kind: input, shape index: {}]
  %s6 = inlined_call_operand.hbm [shape: f32[256,128], index: 6, kind: output, shape index: {}]
  %s7 = sld [smem:[#allocation0]]
  $region61: #{tpu_custom_call.1} parent=0
    _
  %s9 = ssub.s32 1, %s7
  %s10 = scalar_select 0, %s9, %s7
  $region1: #{tpu_custom_call.1} parent=0
    #allocation2 [shape = 'u8[24576]{0}', space=vmem, size = 0x6000, scoped, tag = 'input window, operand 1, single buffered']
    #allocation3 [shape = 's32[2]{0}', space=sflag, size = 0x8, scoped, tag = 'scoped memory for tpu_custom_call.1']
    #allocation4 [shape = 's32[2]{0}', space=sflag, size = 0x8, scoped, tag = 'scoped memory for tpu_custom_call.1']
    #allocation5 [shape = 'u8[131072]{0}', space=vmem, size = 0x20000, scoped, tag = 'output window, operand 0']
    %11 = vsyncpa [#allocation3], 0
    %12 = vsyncpa [#allocation4], 0
    %s13 = scalar_lea.sflag [#allocation4], 1
    %14 = vsyncpa %s13, 0
    loop: start=0, step=1, limit=4
    $region2: #{tpu_custom_call.1} parent=1 // loop_pre_header
      _
    $region3: #{tpu_custom_call.1} parent=1 // loop_header
      %s16 = sphi 0, %s20
      %p17 = scmp.ge.s32.totalorder %s16, 4
      %s26 = sphi 0, %s28
      %s29 = sphi 0, %s26
      %s30 = sphi 0, %s29
      %s46 = sphi 0, %s30
      %s50 = sphi 0, %s50
      %s52 = sphi 0, %s50
      %s53 = sphi 0, %s52
      %s67 = sphi 0, %s53
      %s71 = sphi 0, %s71
      %s73 = sphi 0, %s71
      %s74 = sphi 0, %s73
      %s88 = sphi 0, %s74
      %s92 = sphi 0, %s92
      %s94 = sphi 0, %s92
      %s95 = sphi 0, %s94
      %s109 = sphi 0, %s95
      %s113 = sphi 0, %s113
      %s115 = sphi 0, %s113
      %s116 = sphi 0, %s115
      %s130 = sphi 0, %s116
      %s134 = sphi 0, %s134
      %s136 = sphi 0, %s134
      %s137 = sphi 0, %s136
      %s151 = sphi 0, %s137
      %s157 = sphi 0, %s159
      %s160 = sphi 0, %s157
      %s161 = sphi 0, %s160
      %s177 = sphi 0, %s161
    $region4: #{tpu_custom_call.1} parent=1 // loop_header_branch
      %19 = sbr.rel (%p17) target = $region8
    $region5: #{tpu_custom_call.1} parent=1 // loop_body
      %s21 = ssub.s32 %s16, 1
      %s22 = ssub.s32 %s16, 2
      %s23 = sadd.s32 %s16, 1
      %s24 = ssub.s32 %s16, %s23
      %p25 = scmp.eq.s32.totalorder %s24, 0
      %s27 = sadd.s32 %s26, 1
      %s28 = scalar_select %p25, %s26, %s27
      %p31 = pneg %p25
      %p32 = scmp.eq.s32.totalorder %s16, 1
      %p33 = por %p31, %p32
      %p34 = scmp.ne.s32.totalorder %s26, %s29
      %p35 = scmp.eq.s32.totalorder %s16, 0
      %p36 = por %p34, %p35
      %p37 = scmp.ne.s32.totalorder %s26, %s29
      %p38 = scmp.eq.s32.totalorder %s21, 1
      %p39 = por %p37, %p38
      %p40 = scmp.ne.s32.totalorder %s29, %s30
      %p41 = scmp.eq.s32.totalorder %s21, 0
      %p42 = por %p40, %p41
      %p43 = scmp.ne.s32.totalorder %s29, %s30
      %p44 = scmp.eq.s32.totalorder %s22, 1
      %p45 = por %p43, %p44
      %p47 = scmp.ne.s32.totalorder %s30, %s46
      %p48 = scmp.eq.s32.totalorder %s22, 0
      %p49 = por %p47, %p48
      %s51 = sadd.s32 %s50, 1
      %p54 = scmp.eq.s32.totalorder %s16, 1
      %p55 = scmp.ne.s32.totalorder %s50, %s52
      %p56 = scmp.eq.s32.totalorder %s16, 0
      %p57 = por %p55, %p56
      %p58 = scmp.ne.s32.totalorder %s50, %s52
      %p59 = scmp.eq.s32.totalorder %s21, 1
      %p60 = por %p58, %p59
      %p61 = scmp.ne.s32.totalorder %s52, %s53
      %p62 = scmp.eq.s32.totalorder %s21, 0
      %p63 = por %p61, %p62
      %p64 = scmp.ne.s32.totalorder %s52, %s53
      %p65 = scmp.eq.s32.totalorder %s22, 1
      %p66 = por %p64, %p65
      %p68 = scmp.ne.s32.totalorder %s53, %s67
      %p69 = scmp.eq.s32.totalorder %s22, 0
      %p70 = por %p68, %p69
      %s72 = sadd.s32 %s71, 1
      %p75 = scmp.eq.s32.totalorder %s16, 1
      %p76 = scmp.ne.s32.totalorder %s71, %s73
      %p77 = scmp.eq.s32.totalorder %s16, 0
      %p78 = por %p76, %p77
      %p79 = scmp.ne.s32.totalorder %s71, %s73
      %p80 = scmp.eq.s32.totalorder %s21, 1
      %p81 = por %p79, %p80
      %p82 = scmp.ne.s32.totalorder %s73, %s74
      %p83 = scmp.eq.s32.totalorder %s21, 0
      %p84 = por %p82, %p83
      %p85 = scmp.ne.s32.totalorder %s73, %s74
      %p86 = scmp.eq.s32.totalorder %s22, 1
      %p87 = por %p85, %p86
      %p89 = scmp.ne.s32.totalorder %s74, %s88
      %p90 = scmp.eq.s32.totalorder %s22, 0
      %p91 = por %p89, %p90
      %s93 = sadd.s32 %s92, 1
      %p96 = scmp.eq.s32.totalorder %s16, 1
      %p97 = scmp.ne.s32.totalorder %s92, %s94
      %p98 = scmp.eq.s32.totalorder %s16, 0
      %p99 = por %p97, %p98
      %p100 = scmp.ne.s32.totalorder %s92, %s94
      %p101 = scmp.eq.s32.totalorder %s21, 1
      %p102 = por %p100, %p101
      %p103 = scmp.ne.s32.totalorder %s94, %s95
      %p104 = scmp.eq.s32.totalorder %s21, 0
      %p105 = por %p103, %p104
      %p106 = scmp.ne.s32.totalorder %s94, %s95
      %p107 = scmp.eq.s32.totalorder %s22, 1
      %p108 = por %p106, %p107
      %p110 = scmp.ne.s32.totalorder %s95, %s109
      %p111 = scmp.eq.s32.totalorder %s22, 0
      %p112 = por %p110, %p111
      %s114 = sadd.s32 %s113, 1
      %p117 = scmp.eq.s32.totalorder %s16, 1
      %p118 = scmp.ne.s32.totalorder %s113, %s115
      %p119 = scmp.eq.s32.totalorder %s16, 0
      %p120 = por %p118, %p119
      %p121 = scmp.ne.s32.totalorder %s113, %s115
      %p122 = scmp.eq.s32.totalorder %s21, 1
      %p123 = por %p121, %p122
      %p124 = scmp.ne.s32.totalorder %s115, %s116
      %p125 = scmp.eq.s32.totalorder %s21, 0
      %p126 = por %p124, %p125
      %p127 = scmp.ne.s32.totalorder %s115, %s116
      %p128 = scmp.eq.s32.totalorder %s22, 1
      %p129 = por %p127, %p128
      %p131 = scmp.ne.s32.totalorder %s116, %s130
      %p132 = scmp.eq.s32.totalorder %s22, 0
      %p133 = por %p131, %p132
      %s135 = sadd.s32 %s134, 1
      %p138 = scmp.eq.s32.totalorder %s16, 1
      %p139 = scmp.ne.s32.totalorder %s134, %s136
      %p140 = scmp.eq.s32.totalorder %s16, 0
      %p141 = por %p139, %p140
      %p142 = scmp.ne.s32.totalorder %s134, %s136
      %p143 = scmp.eq.s32.totalorder %s21, 1
      %p144 = por %p142, %p143
      %p145 = scmp.ne.s32.totalorder %s136, %s137
      %p146 = scmp.eq.s32.totalorder %s21, 0
      %p147 = por %p145, %p146
      %p148 = scmp.ne.s32.totalorder %s136, %s137
      %p149 = scmp.eq.s32.totalorder %s22, 1
      %p150 = por %p148, %p149
      %p152 = scmp.ne.s32.totalorder %s137, %s151
      %p153 = scmp.eq.s32.totalorder %s22, 0
      %p154 = por %p152, %p153
      %s155 = ssub.s32 %s16, %s23
      %p156 = scmp.eq.s32.totalorder %s155, 0
      %s158 = sadd.s32 %s157, 1
      %s159 = scalar_select %p156, %s157, %s158
      %p162 = pneg %p156
      %p163 = scmp.eq.s32.totalorder %s16, 1
      %p164 = por %p162, %p163
      %p165 = scmp.ne.s32.totalorder %s157, %s160
      %p166 = scmp.eq.s32.totalorder %s16, 0
      %p167 = por %p165, %p166
      %p168 = scmp.ne.s32.totalorder %s157, %s160
      %p169 = scmp.eq.s32.totalorder %s21, 1
      %p170 = por %p168, %p169
      %p171 = scmp.ne.s32.totalorder %s160, %s161
      %p172 = scmp.eq.s32.totalorder %s21, 0
      %p173 = por %p171, %p172
      %p174 = scmp.ne.s32.totalorder %s160, %s161
      %p175 = scmp.eq.s32.totalorder %s22, 1
      %p176 = por %p174, %p175
      %p178 = scmp.ne.s32.totalorder %s161, %s177
      %p179 = scmp.eq.s32.totalorder %s22, 0
      %p180 = por %p178, %p179
      %p181 = scmp.le.s32.totalorder 1, %s16
      %p182 = scmp.lt.s32.totalorder %s16, 3
      %p183 = pnand %p181, %p182
      %p184 = pneg %p183
      // Predicated region
      $region9: #{tpu_custom_call.1} parent=5 // pred_check
        _
      $region10: #{tpu_custom_call.1} parent=5 // pred_check_branch
        %186 = sbr.rel (%p183) target = $region12
      $region11: #{tpu_custom_call.1} parent=5 // pred_region
        %s187 = ssub.s32 %s16, 1
        // Predicated region
        $region13: #{tpu_custom_call.1} parent=11 // pred_check
          %p188 = pneg %p63
        $region14: #{tpu_custom_call.1} parent=11 // pred_check_branch
          %190 = sbr.rel (%p188) target = $region16
        $region15: #{tpu_custom_call.1} parent=11 // pred_region
          %s192 = ssub.s32 768, 768
          %193 = vsyncadd [#allocation3], %s192
          %s194 = sshll.u32 [#allocation2], 4
          %s195 = int_to_ptr.vmem [resolvable:$true] %s194
          %200 = dma.hbm_to_vmem [thread:$0]  %s1, 768, %s195, [#allocation3], 192, 192, 12
        $region16: #{tpu_custom_call.1} parent=11 // pred_fallthru
          _
        // Predicated region
        $region17: #{tpu_custom_call.1} parent=11 // pred_check
          %p201 = pneg %p84
        $region18: #{tpu_custom_call.1} parent=11 // pred_check_branch
          %203 = sbr.rel (%p201) target = $region20
        $region19: #{tpu_custom_call.1} parent=11 // pred_region
          _
        $region20: #{tpu_custom_call.1} parent=11 // pred_fallthru
          _
        // Predicated region
        $region21: #{tpu_custom_call.1} parent=11 // pred_check
          %p204 = pneg %p105
        $region22: #{tpu_custom_call.1} parent=11 // pred_check_branch
          %206 = sbr.rel (%p204) target = $region24
        $region23: #{tpu_custom_call.1} parent=11 // pred_region
          _
        $region24: #{tpu_custom_call.1} parent=11 // pred_fallthru
          _
        // Predicated region
        $region25: #{tpu_custom_call.1} parent=11 // pred_check
          %p207 = pneg %p126
        $region26: #{tpu_custom_call.1} parent=11 // pred_check_branch
          %209 = sbr.rel (%p207) target = $region28
        $region27: #{tpu_custom_call.1} parent=11 // pred_region
          _
        $region28: #{tpu_custom_call.1} parent=11 // pred_fallthru
          _
        // Predicated region
        $region29: #{tpu_custom_call.1} parent=11 // pred_check
          %p210 = pneg %p147
        $region30: #{tpu_custom_call.1} parent=11 // pred_check_branch
          %212 = sbr.rel (%p210) target = $region32
        $region31: #{tpu_custom_call.1} parent=11 // pred_region
          _
        $region32: #{tpu_custom_call.1} parent=11 // pred_fallthru
          _
      $region12: #{tpu_custom_call.1} parent=5 // pred_fallthru
        _
      %p213 = scmp.lt.s32.totalorder %s16, 2
      // Predicated region
      $region33: #{tpu_custom_call.1} parent=5 // pred_check
        %p214 = pneg %p213
      $region34: #{tpu_custom_call.1} parent=5 // pred_check_branch
        %216 = sbr.rel (%p214) target = $region36
      $region35: #{tpu_custom_call.1} parent=5 // pred_region
        // Predicated region
        $region37: #{tpu_custom_call.1} parent=35 // pred_check
          %p217 = pneg %p36
        $region38: #{tpu_custom_call.1} parent=35 // pred_check_branch
          %219 = sbr.rel (%p217) target = $region40
        $region39: #{tpu_custom_call.1} parent=35 // pred_region
          %s220 = smul.u32 16, %s16
          %p221 = scmp.lt.s32.totalorder %s220, 31
          %s222 = scalar_select %p221, %s220, 31
          %s223 = smul.addr %s222, 4
          %s224 = scalar_lea.vmem %s0, %s223
          %s225 = smul.u32 16, %s16
        $region40: #{tpu_custom_call.1} parent=35 // pred_fallthru
          _
      $region36: #{tpu_custom_call.1} parent=5 // pred_fallthru
        _
      %p226 = scmp.le.s32.totalorder 1, %s16
      %p227 = scmp.lt.s32.totalorder %s16, 3
      %p228 = pnand %p226, %p227
      %p229 = pneg %p228
      // Predicated region
      $region41: #{tpu_custom_call.1} parent=5 // pred_check
        _
      $region42: #{tpu_custom_call.1} parent=5 // pred_check_branch
        %231 = sbr.rel (%p228) target = $region44
      $region43: #{tpu_custom_call.1} parent=5 // pred_region
        %s232 = ssub.s32 %s16, 1
        // Predicated region
        $region45: #{tpu_custom_call.1} parent=43 // pred_check
          %p233 = pneg %p63
        $region46: #{tpu_custom_call.1} parent=43 // pred_check_branch
          %235 = sbr.rel (%p233) target = $region48
        $region47: #{tpu_custom_call.1} parent=43 // pred_region
          %236 = dma.done [#allocation3], 768
        $region48: #{tpu_custom_call.1} parent=43 // pred_fallthru
          _
        %s237 = smul.u32 16, %s21
        %p238 = scmp.lt.s32.totalorder %s237, 31
        %s239 = scalar_select %p238, %s237, 31
        %s240 = smul.addr %s239, 4
        %s241 = scalar_lea.vmem %s0, %s240
        %p242 = pneg %p42
        %p243 = pneg %p39
        %p244 = pneg %p63
        %p245 = pneg %p60
        %p246 = pneg %p84
        %p247 = pneg %p81
        %p248 = pneg %p105
        %p249 = pneg %p102
        %p250 = pneg %p126
        %p251 = pneg %p123
        %p252 = pneg %p147
        %p253 = pneg %p144
        %p254 = pneg %p173
        %p255 = pneg %p170
        %s256 = sand.u32 %s160, 1
        %s257 = scalar_lea.sflag [#allocation4], %s256
        %s258 = sand.u32 %s160, 1
        %s259 = smul.addr %s258, 128
        %s260 = scalar_lea.vmem [#allocation5], %s259
        %s261 = smul.u32 16, %s21
        %p262 = scmp.lt.s32.totalorder %s261, 31
        %s263 = scalar_select %p262, %s261, 31
        %s264 = smul.addr %s263, 4
        %s265 = scalar_lea.vmem %s0, %s264
        %s266 = smul.u32 16, %s21
        %s267 = smul.u32 16, %s21
        %v269 = vld [vmem:[%s265] sm:$0xf]
        %v270 = vld [vmem:[%s265 + $0x4] sm:$0xf]
        %v271 = vld [vmem:[%s265 + $0x8] sm:$0xf]
        %v272 = vld [vmem:[%s265 + $0xc] sm:$0xf]
        %v273 = vld [vmem:[%s265 + $0x10] sm:$0xf]
        %v274 = vld [vmem:[%s265 + $0x14] sm:$0xf]
        %v275 = vld [vmem:[%s265 + $0x18] sm:$0xf]
        %v276 = vld [vmem:[%s265 + $0x1c] sm:$0xf]
        %v277 = vld [vmem:[%s265 + $0x20] sm:$0xf]
        %v278 = vld [vmem:[%s265 + $0x24] sm:$0xf]
        %v279 = vld [vmem:[%s265 + $0x28] sm:$0xf]
        %v280 = vld [vmem:[%s265 + $0x2c] sm:$0xf]
        %v281 = vld [vmem:[%s265 + $0x30] sm:$0xf]
        %v282 = vld [vmem:[%s265 + $0x34] sm:$0xf]
        %v283 = vld [vmem:[%s265 + $0x38] sm:$0xf]
        %v284 = vld [vmem:[%s265 + $0x3c] sm:$0xf]
        %v285 = vld [vmem:[#allocation2] sm:$0xff]
        %v286 = vld [vmem:[#allocation2 + $0x8] sm:$0xf]
        %v287 = vld [vmem:[#allocation2 + $0xc] sm:$0xff]
        %v288 = vld [vmem:[#allocation2 + $0x14] sm:$0xf]
        %v289 = vld [vmem:[#allocation2 + $0x18] sm:$0xff]
        %v290 = vld [vmem:[#allocation2 + $0x20] sm:$0xf]
        %v291 = vld [vmem:[#allocation2 + $0x24] sm:$0xff]
        %v292 = vld [vmem:[#allocation2 + $0x2c] sm:$0xf]
        %v293 = vld [vmem:[%s2] sm:$0x7]
        %v295 = vlaneseq
        %v296 = vshrl.u32 %v295, 7
        %v297 = vsub.s32 0, %v296
        %v298 = vrot.slane %v293, %v297
        %v299 = vlaneseq
        %v300 = vshrl.u32 %v299, 7
        %v301 = vsub.s32 1, %v300
        %v302 = vrot.slane %v293, %v301
        %v303 = vlaneseq
        %v304 = vshrl.u32 %v303, 7
        %v305 = vsub.s32 2, %v304
        %v306 = vrot.slane %v293, %v305
        %v326 = vunpack.c.l.b16 %v269
        %v327 = vunpack.c.l.b16 %v270
        %v328 = vunpack.c.l.b16 %v271
        %v329 = vunpack.c.l.b16 %v272
        %v330 = vunpack.c.l.b16 %v273
        %v331 = vunpack.c.l.b16 %v274
        %v332 = vunpack.c.l.b16 %v275
        %v333 = vunpack.c.l.b16 %v276
        %v334 = vunpack.c.l.b16 %v277
        %v335 = vunpack.c.l.b16 %v278
        %v336 = vunpack.c.l.b16 %v279
        %v337 = vunpack.c.l.b16 %v280
        %v338 = vunpack.c.l.b16 %v281
        %v339 = vunpack.c.l.b16 %v282
        %v340 = vunpack.c.l.b16 %v283
        %v341 = vunpack.c.l.b16 %v284
        %v342 = vpack.c.b16 %v327, %v326
        %v343 = vpack.c.b16 %v329, %v328
        %v344 = vpack.c.b16 %v331, %v330
        %v345 = vpack.c.b16 %v333, %v332
        %v346 = vpack.c.b16 %v335, %v334
        %v347 = vpack.c.b16 %v337, %v336
        %v348 = vpack.c.b16 %v339, %v338
        %v349 = vpack.c.b16 %v341, %v340
        %v358 = vunpack.c.l.b16 %v285
        %v359 = vunpack.c.h.b16 %v285
        %v360 = vunpack.c.l.b16 %v286
        %v361 = vunpack.c.l.b16 %v287
        %v362 = vunpack.c.h.b16 %v287
        %v363 = vunpack.c.l.b16 %v288
        %v364 = vunpack.c.l.b16 %v289
        %v365 = vunpack.c.h.b16 %v289
        %v366 = vunpack.c.l.b16 %v290
        %v367 = vunpack.c.l.b16 %v291
        %v368 = vunpack.c.h.b16 %v291
        %v369 = vunpack.c.l.b16 %v292
        %v370 = vpack.c.b16 %v361, %v358
        %v371 = vpack.c.b16 %v362, %v359
        %v372 = vpack.c.b16 %v363, %v360
        %v373 = vpack.c.b16 %v367, %v364
        %v374 = vpack.c.b16 %v368, %v365
        %v375 = vpack.c.b16 %v369, %v366
        %vm382 = vcmask 261120
        %v384 = vsel %vm382, %v342, 0
        %v387 = vsel %vm382, %v343, 0
        %v390 = vsel %vm382, %v344, 0
        %v393 = vsel %vm382, %v345, 0
        %v396 = vsel %vm382, %v346, 0
        %v399 = vsel %vm382, %v347, 0
        %v402 = vsel %vm382, %v348, 0
        %v405 = vsel %vm382, %v349, 0
        %407 = vmatprep.subr.bf16.mxu0 %v371
        %408 = vmatpush1.bf16.msra.mxu0 %v370
        %409 = vmatprep.subr.bf16.mxu0 %v374
        %410 = vmatpush1.bf16.msra.mxu0 %v373
        %411 = vmatprep.subr.bf16.mxu0 0
        %412 = vmatpush1.bf16.msra.mxu0 0
        %413 = vmatprep.subr.bf16.mxu0 0
        %414 = vmatpush1.bf16.msra.mxu0 0
        %415 = vmatprep.subr.bf16.mxu0 0
        %416 = vmatpush1.bf16.msra.mxu0 0
        %417 = vmatprep.subr.bf16.mxu0 0
        %418 = vmatpush1.bf16.msra.mxu0 0
        %419 = vmatprep.subr.bf16.mxu0 0
        %420 = vmatpush1.bf16.msra.mxu0 0
        %421 = vmatprep.subr.bf16.mxu0 0
        %422 = vmatpush1.bf16.msra.mxu0 0
        %423 = vmatprep.subr.bf16.mxu0 0
        %424 = vmatpush1.bf16.msra.mxu0 0
        %425 = vmatprep.subr.bf16.mxu0 0
        %426 = vmatpush1.bf16.msra.mxu0 0
        %427 = vmatprep.subr.bf16.mxu0 0
        %428 = vmatpush1.bf16.msra.mxu0 0
        %429 = vmatprep.subr.bf16.mxu0 0
        %430 = vmatpush1.bf16.msra.mxu0 0
        %431 = vmatprep.subr.bf16.mxu0 0
        %432 = vmatpush1.bf16.msra.mxu0 0
        %433 = vmatprep.subr.bf16.mxu0 0
        %434 = vmatpush1.bf16.msra.mxu0 0
        %435 = vmatprep.subr.bf16.mxu0 0
        %436 = vmatpush1.bf16.msra.mxu0 0
        %437 = vmatprep.subr.bf16.mxu0 0
        %438 = vmatpush1.bf16.msra.mxu0 0
        %439 = vmatprep.mubr.bf16.mxu0 0
        %440 = vmatmul.mubr.bf16.gmra.mrb[0].mxu0 %v384
        %v441 = vpop.f32.mrb[0].mxu0
        %v442 = vadd.f32 %v298, %v441
        %v443 = vpop.f32.mrb[0].mxu0
        %v444 = vadd.f32 %v302, %v443
        %v445 = vpop.f32.mrb[0].mxu0
        %v446 = vadd.f32 %v298, %v445
        %v447 = vpop.f32.mrb[0].mxu0
        %v448 = vadd.f32 %v302, %v447
        %449 = vmatprep.mubr.bf16.mxu0 0
        %450 = vmatmul.mubr.bf16.gmra.mrb[0].mxu0 %v387
        %v451 = vpop.f32.mrb[0].mxu0
        %v452 = vadd.f32 %v298, %v451
        %v453 = vpop.f32.mrb[0].mxu0
        %v454 = vadd.f32 %v302, %v453
        %v455 = vpop.f32.mrb[0].mxu0
        %v456 = vadd.f32 %v298, %v455
        %v457 = vpop.f32.mrb[0].mxu0
        %v458 = vadd.f32 %v302, %v457
        %459 = vmatprep.mubr.bf16.mxu0 0
        %460 = vmatmul.mubr.bf16.gmra.mrb[0].mxu0 %v390
        %v461 = vpop.f32.mrb[0].mxu0
        %v462 = vadd.f32 %v298, %v461
        %v463 = vpop.f32.mrb[0].mxu0
        %v464 = vadd.f32 %v302, %v463
        %v465 = vpop.f32.mrb[0].mxu0
        %v466 = vadd.f32 %v298, %v465
        %v467 = vpop.f32.mrb[0].mxu0
        %v468 = vadd.f32 %v302, %v467
        %469 = vmatprep.mubr.bf16.mxu0 0
        %470 = vmatmul.mubr.bf16.gmra.mrb[0].mxu0 %v393
        %v471 = vpop.f32.mrb[0].mxu0
        %v472 = vadd.f32 %v298, %v471
        %v473 = vpop.f32.mrb[0].mxu0
        %v474 = vadd.f32 %v302, %v473
        %v475 = vpop.f32.mrb[0].mxu0
        %v476 = vadd.f32 %v298, %v475
        %v477 = vpop.f32.mrb[0].mxu0
        %v478 = vadd.f32 %v302, %v477
        %479 = vmatprep.mubr.bf16.mxu0 0
        %480 = vmatmul.mubr.bf16.gmra.mrb[0].mxu0 %v396
        %v481 = vpop.f32.mrb[0].mxu0
        %v482 = vadd.f32 %v298, %v481
        %v483 = vpop.f32.mrb[0].mxu0
        %v484 = vadd.f32 %v302, %v483
        %v485 = vpop.f32.mrb[0].mxu0
        %v486 = vadd.f32 %v298, %v485
        %v487 = vpop.f32.mrb[0].mxu0
        %v488 = vadd.f32 %v302, %v487
        %489 = vmatprep.mubr.bf16.mxu0 0
        %490 = vmatmul.mubr.bf16.gmra.mrb[0].mxu0 %v399
        %v491 = vpop.f32.mrb[0].mxu0
        %v492 = vadd.f32 %v298, %v491
        %v493 = vpop.f32.mrb[0].mxu0
        %v494 = vadd.f32 %v302, %v493
        %v495 = vpop.f32.mrb[0].mxu0
        %v496 = vadd.f32 %v298, %v495
        %v497 = vpop.f32.mrb[0].mxu0
        %v498 = vadd.f32 %v302, %v497
        %499 = vmatprep.mubr.bf16.mxu0 0
        %500 = vmatmul.mubr.bf16.gmra.mrb[0].mxu0 %v402
        %v501 = vpop.f32.mrb[0].mxu0
        %v502 = vadd.f32 %v298, %v501
        %v503 = vpop.f32.mrb[0].mxu0
        %v504 = vadd.f32 %v302, %v503
        %v505 = vpop.f32.mrb[0].mxu0
        %v506 = vadd.f32 %v298, %v505
        %v507 = vpop.f32.mrb[0].mxu0
        %v508 = vadd.f32 %v302, %v507
        %509 = vmatprep.mubr.bf16.mxu0 0
        %510 = vmatmul.mubr.bf16.gmra.mrb[0].mxu0 %v405
        %v511 = vpop.f32.mrb[0].mxu0
        %v512 = vadd.f32 %v298, %v511
        %v513 = vpop.f32.mrb[0].mxu0
        %v514 = vadd.f32 %v302, %v513
        %v515 = vpop.f32.mrb[0].mxu0
        %v516 = vadd.f32 %v298, %v515
        %v517 = vpop.f32.mrb[0].mxu0
        %v518 = vadd.f32 %v302, %v517
        %519 = vdwg.mxu0
        %520 = vmatprep.subr.bf16.mxu0 0
        %521 = vmatpush1.bf16.msra.mxu0 %v372
        %522 = vmatprep.subr.bf16.mxu0 0
        %523 = vmatpush1.bf16.msra.mxu0 %v375
        %524 = vmatprep.subr.bf16.mxu0 0
        %525 = vmatpush1.bf16.msra.mxu0 0
        %526 = vmatprep.subr.bf16.mxu0 0
        %527 = vmatpush1.bf16.msra.mxu0 0
        %528 = vmatprep.subr.bf16.mxu0 0
        %529 = vmatpush1.bf16.msra.mxu0 0
        %530 = vmatprep.subr.bf16.mxu0 0
        %531 = vmatpush1.bf16.msra.mxu0 0
        %532 = vmatprep.subr.bf16.mxu0 0
        %533 = vmatpush1.bf16.msra.mxu0 0
        %534 = vmatprep.subr.bf16.mxu0 0
        %535 = vmatpush1.bf16.msra.mxu0 0
        %536 = vmatprep.subr.bf16.mxu0 0
        %537 = vmatpush1.bf16.msra.mxu0 0
        %538 = vmatprep.subr.bf16.mxu0 0
        %539 = vmatpush1.bf16.msra.mxu0 0
        %540 = vmatprep.subr.bf16.mxu0 0
        %541 = vmatpush1.bf16.msra.mxu0 0
        %542 = vmatprep.subr.bf16.mxu0 0
        %543 = vmatpush1.bf16.msra.mxu0 0
        %544 = vmatprep.subr.bf16.mxu0 0
        %545 = vmatpush1.bf16.msra.mxu0 0
        %546 = vmatprep.subr.bf16.mxu0 0
        %547 = vmatpush1.bf16.msra.mxu0 0
        %548 = vmatprep.subr.bf16.mxu0 0
        %549 = vmatpush1.bf16.msra.mxu0 0
        %550 = vmatprep.subr.bf16.mxu0 0
        %551 = vmatpush1.bf16.msra.mxu0 0
        %552 = vmatprep.mubr.bf16.mxu0 0
        %553 = vmatmul.mubr.bf16.gmra.mrb[0].mxu0 %v384
        %v554 = vpop.f32.mrb[0].mxu0
        %v555 = vadd.f32 %v306, %v554
        %v556 = vpop.f32.mrb[0].mxu0
        %v557 = vpop.f32.mrb[0].mxu0
        %v558 = vadd.f32 %v306, %v557
        %v559 = vpop.f32.mrb[0].mxu0
        %560 = vmatprep.mubr.bf16.mxu0 0
        %561 = vmatmul.mubr.bf16.gmra.mrb[0].mxu0 %v387
        %v562 = vpop.f32.mrb[0].mxu0
        %v563 = vadd.f32 %v306, %v562
        %v564 = vpop.f32.mrb[0].mxu0
        %v565 = vpop.f32.mrb[0].mxu0
        %v566 = vadd.f32 %v306, %v565
        %v567 = vpop.f32.mrb[0].mxu0
        %568 = vmatprep.mubr.bf16.mxu0 0
        %569 = vmatmul.mubr.bf16.gmra.mrb[0].mxu0 %v390
        %v570 = vpop.f32.mrb[0].mxu0
        %v571 = vadd.f32 %v306, %v570
        %v572 = vpop.f32.mrb[0].mxu0
        %v573 = vpop.f32.mrb[0].mxu0
        %v574 = vadd.f32 %v306, %v573
        %v575 = vpop.f32.mrb[0].mxu0
        %576 = vmatprep.mubr.bf16.mxu0 0
        %577 = vmatmul.mubr.bf16.gmra.mrb[0].mxu0 %v393
        %v578 = vpop.f32.mrb[0].mxu0
        %v579 = vadd.f32 %v306, %v578
        %v580 = vpop.f32.mrb[0].mxu0
        %v581 = vpop.f32.mrb[0].mxu0
        %v582 = vadd.f32 %v306, %v581
        %v583 = vpop.f32.mrb[0].mxu0
        %584 = vmatprep.mubr.bf16.mxu0 0
        %585 = vmatmul.mubr.bf16.gmra.mrb[0].mxu0 %v396
        %v586 = vpop.f32.mrb[0].mxu0
        %v587 = vadd.f32 %v306, %v586
        %v588 = vpop.f32.mrb[0].mxu0
        %v589 = vpop.f32.mrb[0].mxu0
        %v590 = vadd.f32 %v306, %v589
        %v591 = vpop.f32.mrb[0].mxu0
        %592 = vmatprep.mubr.bf16.mxu0 0
        %593 = vmatmul.mubr.bf16.gmra.mrb[0].mxu0 %v399
        %v594 = vpop.f32.mrb[0].mxu0
        %v595 = vadd.f32 %v306, %v594
        %v596 = vpop.f32.mrb[0].mxu0
        %v597 = vpop.f32.mrb[0].mxu0
        %v598 = vadd.f32 %v306, %v597
        %v599 = vpop.f32.mrb[0].mxu0
        %600 = vmatprep.mubr.bf16.mxu0 0
        %601 = vmatmul.mubr.bf16.gmra.mrb[0].mxu0 %v402
        %v602 = vpop.f32.mrb[0].mxu0
        %v603 = vadd.f32 %v306, %v602
        %v604 = vpop.f32.mrb[0].mxu0
        %v605 = vpop.f32.mrb[0].mxu0
        %v606 = vadd.f32 %v306, %v605
        %v607 = vpop.f32.mrb[0].mxu0
        %608 = vmatprep.mubr.bf16.mxu0 0
        %609 = vmatmul.mubr.bf16.gmra.mrb[0].mxu0 %v405
        %v610 = vpop.f32.mrb[0].mxu0
        %v611 = vadd.f32 %v306, %v610
        %v612 = vpop.f32.mrb[0].mxu0
        %v613 = vpop.f32.mrb[0].mxu0
        %v614 = vadd.f32 %v306, %v613
        %v615 = vpop.f32.mrb[0].mxu0
        %616 = vdwg.mxu0
        %vm617 = vcmask 31744
        %v618 = vsel %vm617, %v555, -inf
        %619 = vmax.xlane.f32.xlu0 %v618
        %v620 = vpop.xlane.xlu0 %619
        %v621 = vsel %vm617, %v558, -inf
        %622 = vmax.xlane.f32.xlu0 %v621
        %v623 = vpop.xlane.xlu0 %622
        %v624 = vsel %vm617, %v563, -inf
        %625 = vmax.xlane.f32.xlu0 %v624
        %v626 = vpop.xlane.xlu0 %625
        %v627 = vsel %vm617, %v566, -inf
        %628 = vmax.xlane.f32.xlu0 %v627
        %v629 = vpop.xlane.xlu0 %628
        %v630 = vsel %vm617, %v571, -inf
        %631 = vmax.xlane.f32.xlu0 %v630
        %v632 = vpop.xlane.xlu0 %631
        %v633 = vsel %vm617, %v574, -inf
        %634 = vmax.xlane.f32.xlu0 %v633
        %v635 = vpop.xlane.xlu0 %634
        %v636 = vsel %vm617, %v579, -inf
        %637 = vmax.xlane.f32.xlu0 %v636
        %v638 = vpop.xlane.xlu0 %637
        %v639 = vsel %vm617, %v582, -inf
        %640 = vmax.xlane.f32.xlu0 %v639
        %v641 = vpop.xlane.xlu0 %640
        %v642 = vsel %vm617, %v587, -inf
        %643 = vmax.xlane.f32.xlu0 %v642
        %v644 = vpop.xlane.xlu0 %643
        %v645 = vsel %vm617, %v590, -inf
        %646 = vmax.xlane.f32.xlu0 %v645
        %v647 = vpop.xlane.xlu0 %646
        %v648 = vsel %vm617, %v595, -inf
        %649 = vmax.xlane.f32.xlu0 %v648
        %v650 = vpop.xlane.xlu0 %649
        %v651 = vsel %vm617, %v598, -inf
        %652 = vmax.xlane.f32.xlu0 %v651
        %v653 = vpop.xlane.xlu0 %652
        %v654 = vsel %vm617, %v603, -inf
        %655 = vmax.xlane.f32.xlu0 %v654
        %v656 = vpop.xlane.xlu0 %655
        %v657 = vsel %vm617, %v606, -inf
        %658 = vmax.xlane.f32.xlu0 %v657
        %v659 = vpop.xlane.xlu0 %658
        %v660 = vsel %vm617, %v611, -inf
        %661 = vmax.xlane.f32.xlu0 %v660
        %v662 = vpop.xlane.xlu0 %661
        %v663 = vsel %vm617, %v614, -inf
        %664 = vmax.xlane.f32.xlu0 %v663
        %v665 = vpop.xlane.xlu0 %664
        %v666 = vsub.f32 %v555, %v620
        %v667 = vsub.f32 %v558, %v623
        %v668 = vsub.f32 %v563, %v626
        %v669 = vsub.f32 %v566, %v629
        %v670 = vsub.f32 %v571, %v632
        %v671 = vsub.f32 %v574, %v635
        %v672 = vsub.f32 %v579, %v638
        %v673 = vsub.f32 %v582, %v641
        %v674 = vsub.f32 %v587, %v644
        %v675 = vsub.f32 %v590, %v647
        %v676 = vsub.f32 %v595, %v650
        %v677 = vsub.f32 %v598, %v653
        %v678 = vsub.f32 %v603, %v656
        %v679 = vsub.f32 %v606, %v659
        %v680 = vsub.f32 %v611, %v662
        %v681 = vsub.f32 %v614, %v665
        %v682 = vmul.f32 %v666, 1.442695
        %v683 = vpow.pop %v682
        %v684 = vmul.f32 %v667, 1.442695
        %v685 = vpow.pop %v684
        %v686 = vmul.f32 %v668, 1.442695
        %v687 = vpow.pop %v686
        %v688 = vmul.f32 %v669, 1.442695
        %v689 = vpow.pop %v688
        %v690 = vmul.f32 %v670, 1.442695
        %v691 = vpow.pop %v690
        %v692 = vmul.f32 %v671, 1.442695
        %v693 = vpow.pop %v692
        %v694 = vmul.f32 %v672, 1.442695
        %v695 = vpow.pop %v694
        %v696 = vmul.f32 %v673, 1.442695
        %v697 = vpow.pop %v696
        %v698 = vmul.f32 %v674, 1.442695
        %v699 = vpow.pop %v698
        %v700 = vmul.f32 %v675, 1.442695
        %v701 = vpow.pop %v700
        %v702 = vmul.f32 %v676, 1.442695
        %v703 = vpow.pop %v702
        %v704 = vmul.f32 %v677, 1.442695
        %v705 = vpow.pop %v704
        %v706 = vmul.f32 %v678, 1.442695
        %v707 = vpow.pop %v706
        %v708 = vmul.f32 %v679, 1.442695
        %v709 = vpow.pop %v708
        %v710 = vmul.f32 %v680, 1.442695
        %v711 = vpow.pop %v710
        %v712 = vmul.f32 %v681, 1.442695
        %v713 = vpow.pop %v712
        %v714 = vsel %vm617, %v683, 0.0
        %715 = vadd.xlane.f32.xlu0 %v714
        %v716 = vpop.xlane.xlu0 %715
        %v717 = vsel %vm617, %v685, 0.0
        %718 = vadd.xlane.f32.xlu0 %v717
        %v719 = vpop.xlane.xlu0 %718
        %v720 = vsel %vm617, %v687, 0.0
        %721 = vadd.xlane.f32.xlu0 %v720
        %v722 = vpop.xlane.xlu0 %721
        %v723 = vsel %vm617, %v689, 0.0
        %724 = vadd.xlane.f32.xlu0 %v723
        %v725 = vpop.xlane.xlu0 %724
        %v726 = vsel %vm617, %v691, 0.0
        %727 = vadd.xlane.f32.xlu0 %v726
        %v728 = vpop.xlane.xlu0 %727
        %v729 = vsel %vm617, %v693, 0.0
        %730 = vadd.xlane.f32.xlu0 %v729
        %v731 = vpop.xlane.xlu0 %730
        %v732 = vsel %vm617, %v695, 0.0
        %733 = vadd.xlane.f32.xlu0 %v732
        %v734 = vpop.xlane.xlu0 %733
        %v735 = vsel %vm617, %v697, 0.0
        %736 = vadd.xlane.f32.xlu0 %v735
        %v737 = vpop.xlane.xlu0 %736
        %v738 = vsel %vm617, %v699, 0.0
        %739 = vadd.xlane.f32.xlu0 %v738
        %v740 = vpop.xlane.xlu0 %739
        %v741 = vsel %vm617, %v701, 0.0
        %742 = vadd.xlane.f32.xlu0 %v741
        %v743 = vpop.xlane.xlu0 %742
        %v744 = vsel %vm617, %v703, 0.0
        %745 = vadd.xlane.f32.xlu0 %v744
        %v746 = vpop.xlane.xlu0 %745
        %v747 = vsel %vm617, %v705, 0.0
        %748 = vadd.xlane.f32.xlu0 %v747
        %v749 = vpop.xlane.xlu0 %748
        %v750 = vsel %vm617, %v707, 0.0
        %751 = vadd.xlane.f32.xlu0 %v750
        %v752 = vpop.xlane.xlu0 %751
        %v753 = vsel %vm617, %v709, 0.0
        %754 = vadd.xlane.f32.xlu0 %v753
        %v755 = vpop.xlane.xlu0 %754
        %v756 = vsel %vm617, %v711, 0.0
        %757 = vadd.xlane.f32.xlu0 %v756
        %v758 = vpop.xlane.xlu0 %757
        %v759 = vsel %vm617, %v713, 0.0
        %760 = vadd.xlane.f32.xlu0 %v759
        %v761 = vpop.xlane.xlu0 %760
        %v762 = vrcp.pop %v716
        %v763 = vrcp.pop %v719
        %v764 = vrcp.pop %v722
        %v765 = vrcp.pop %v725
        %v766 = vrcp.pop %v728
        %v767 = vrcp.pop %v731
        %v768 = vrcp.pop %v734
        %v769 = vrcp.pop %v737
        %v770 = vrcp.pop %v740
        %v771 = vrcp.pop %v743
        %v772 = vrcp.pop %v746
        %v773 = vrcp.pop %v749
        %v774 = vrcp.pop %v752
        %v775 = vrcp.pop %v755
        %v776 = vrcp.pop %v758
        %v777 = vrcp.pop %v761
        %v778 = vmul.f32 %v683, %v762
        %v779 = vmul.f32 %v685, %v763
        %v780 = vmul.f32 %v687, %v764
        %v781 = vmul.f32 %v689, %v765
        %v782 = vmul.f32 %v691, %v766
        %v783 = vmul.f32 %v693, %v767
        %v784 = vmul.f32 %v695, %v768
        %v785 = vmul.f32 %v697, %v769
        %v786 = vmul.f32 %v699, %v770
        %v787 = vmul.f32 %v701, %v771
        %v788 = vmul.f32 %v703, %v772
        %v789 = vmul.f32 %v705, %v773
        %v790 = vmul.f32 %v707, %v774
        %v791 = vmul.f32 %v709, %v775
        %v792 = vmul.f32 %v711, %v776
        %v793 = vmul.f32 %v713, %v777
        %v794 = vpack.c.bf16 %v779, %v778
        %v795 = vpack.c.bf16 %v781, %v780
        %v796 = vpack.c.bf16 %v783, %v782
        %v797 = vpack.c.bf16 %v785, %v784
        %v798 = vpack.c.bf16 %v787, %v786
        %v799 = vpack.c.bf16 %v789, %v788
        %v800 = vpack.c.bf16 %v791, %v790
        %v801 = vpack.c.bf16 %v793, %v792
        %v802 = vmax.f32 %v442, 0.0
        %v803 = vmax.f32 %v444, 0.0
        %v804 = vmax.f32 %v446, 0.0
        %v805 = vmax.f32 %v448, 0.0
        %v806 = vmax.f32 %v452, 0.0
        %v807 = vmax.f32 %v454, 0.0
        %v808 = vmax.f32 %v456, 0.0
        %v809 = vmax.f32 %v458, 0.0
        %v810 = vmax.f32 %v462, 0.0
        %v811 = vmax.f32 %v464, 0.0
        %v812 = vmax.f32 %v466, 0.0
        %v813 = vmax.f32 %v468, 0.0
        %v814 = vmax.f32 %v472, 0.0
        %v815 = vmax.f32 %v474, 0.0
        %v816 = vmax.f32 %v476, 0.0
        %v817 = vmax.f32 %v478, 0.0
        %v818 = vmax.f32 %v482, 0.0
        %v819 = vmax.f32 %v484, 0.0
        %v820 = vmax.f32 %v486, 0.0
        %v821 = vmax.f32 %v488, 0.0
        %v822 = vmax.f32 %v492, 0.0
        %v823 = vmax.f32 %v494, 0.0
        %v824 = vmax.f32 %v496, 0.0
        %v825 = vmax.f32 %v498, 0.0
        %v826 = vmax.f32 %v502, 0.0
        %v827 = vmax.f32 %v504, 0.0
        %v828 = vmax.f32 %v506, 0.0
        %v829 = vmax.f32 %v508, 0.0
        %v830 = vmax.f32 %v512, 0.0
        %v831 = vmax.f32 %v514, 0.0
        %v832 = vmax.f32 %v516, 0.0
        %v833 = vmax.f32 %v518, 0.0
        %v834 = vld [vmem:[%s3] sm:$0xf]
        %v837 = vunpack.c.l.s4 1983009808
        %v838 = vunpack.c.0.s8 %v837
        %v839 = vlaneseq
        %v840 = vshrl.u32 %v839, 7
        %v841 = vsub.s32 %v838, %v840
        %v842 = vrot.slane %v834, %v841
        %v843 = vcombine.high %v842, %v842
        %v845 = vsel %vm617, %v794, 0
        %v848 = vsel %vm617, %v795, 0
        %v851 = vsel %vm617, %v796, 0
        %v854 = vsel %vm617, %v797, 0
        %v857 = vsel %vm617, %v798, 0
        %v860 = vsel %vm617, %v799, 0
        %v863 = vsel %vm617, %v800, 0
        %v866 = vsel %vm617, %v801, 0
        %vm868 = vcmask 1041408
        %v870 = vsel %vm868, %v842, 0
        %v873 = vsel %vm868, %v843, 0
        %875 = vmatprep.subr.bf16.mxu0 %v873
        %876 = vmatpush1.bf16.msra.mxu0 %v870
        %877 = vmatprep.subr.bf16.mxu0 0
        %878 = vmatpush1.bf16.msra.mxu0 0
        %879 = vmatprep.subr.bf16.mxu0 0
        %880 = vmatpush1.bf16.msra.mxu0 0
        %881 = vmatprep.subr.bf16.mxu0 0
        %882 = vmatpush1.bf16.msra.mxu0 0
        %883 = vmatprep.subr.bf16.mxu0 0
        %884 = vmatpush1.bf16.msra.mxu0 0
        %885 = vmatprep.subr.bf16.mxu0 0
        %886 = vmatpush1.bf16.msra.mxu0 0
        %887 = vmatprep.subr.bf16.mxu0 0
        %888 = vmatpush1.bf16.msra.mxu0 0
        %889 = vmatprep.subr.bf16.mxu0 0
        %890 = vmatpush1.bf16.msra.mxu0 0
        %891 = vmatprep.subr.bf16.mxu0 0
        %892 = vmatpush1.bf16.msra.mxu0 0
        %893 = vmatprep.subr.bf16.mxu0 0
        %894 = vmatpush1.bf16.msra.mxu0 0
        %895 = vmatprep.subr.bf16.mxu0 0
        %896 = vmatpush1.bf16.msra.mxu0 0
        %897 = vmatprep.subr.bf16.mxu0 0
        %898 = vmatpush1.bf16.msra.mxu0 0
        %899 = vmatprep.subr.bf16.mxu0 0
        %900 = vmatpush1.bf16.msra.mxu0 0
        %901 = vmatprep.subr.bf16.mxu0 0
        %902 = vmatpush1.bf16.msra.mxu0 0
        %903 = vmatprep.subr.bf16.mxu0 0
        %904 = vmatpush1.bf16.msra.mxu0 0
        %905 = vmatprep.subr.bf16.mxu0 0
        %906 = vmatpush1.bf16.msra.mxu0 0
        %907 = vmatprep.mubr.bf16.mxu0 0
        %908 = vmatmul.mubr.bf16.gmra.mrb[0].mxu0 %v845
        %v909 = vpop.f32.mrb[0].mxu0
        %v910 = vadd.f32 0.0, %v909
        %v911 = vpop.f32.mrb[0].mxu0
        %v912 = vadd.f32 0.0, %v911
        %v913 = vpop.f32.mrb[0].mxu0
        %v914 = vadd.f32 0.0, %v913
        %v915 = vpop.f32.mrb[0].mxu0
        %v916 = vadd.f32 0.0, %v915
        %917 = vmatprep.mubr.bf16.mxu0 0
        %918 = vmatmul.mubr.bf16.gmra.mrb[0].mxu0 %v848
        %v919 = vpop.f32.mrb[0].mxu0
        %v920 = vadd.f32 0.0, %v919
        %v921 = vpop.f32.mrb[0].mxu0
        %v922 = vadd.f32 0.0, %v921
        %v923 = vpop.f32.mrb[0].mxu0
        %v924 = vadd.f32 0.0, %v923
        %v925 = vpop.f32.mrb[0].mxu0
        %v926 = vadd.f32 0.0, %v925
        %927 = vmatprep.mubr.bf16.mxu0 0
        %928 = vmatmul.mubr.bf16.gmra.mrb[0].mxu0 %v851
        %v929 = vpop.f32.mrb[0].mxu0
        %v930 = vadd.f32 0.0, %v929
        %v931 = vpop.f32.mrb[0].mxu0
        %v932 = vadd.f32 0.0, %v931
        %v933 = vpop.f32.mrb[0].mxu0
        %v934 = vadd.f32 0.0, %v933
        %v935 = vpop.f32.mrb[0].mxu0
        %v936 = vadd.f32 0.0, %v935
        %937 = vmatprep.mubr.bf16.mxu0 0
        %938 = vmatmul.mubr.bf16.gmra.mrb[0].mxu0 %v854
        %v939 = vpop.f32.mrb[0].mxu0
        %v940 = vadd.f32 0.0, %v939
        %v941 = vpop.f32.mrb[0].mxu0
        %v942 = vadd.f32 0.0, %v941
        %v943 = vpop.f32.mrb[0].mxu0
        %v944 = vadd.f32 0.0, %v943
        %v945 = vpop.f32.mrb[0].mxu0
        %v946 = vadd.f32 0.0, %v945
        %947 = vmatprep.mubr.bf16.mxu0 0
        %948 = vmatmul.mubr.bf16.gmra.mrb[0].mxu0 %v857
        %v949 = vpop.f32.mrb[0].mxu0
        %v950 = vadd.f32 0.0, %v949
        %v951 = vpop.f32.mrb[0].mxu0
        %v952 = vadd.f32 0.0, %v951
        %v953 = vpop.f32.mrb[0].mxu0
        %v954 = vadd.f32 0.0, %v953
        %v955 = vpop.f32.mrb[0].mxu0
        %v956 = vadd.f32 0.0, %v955
        %957 = vmatprep.mubr.bf16.mxu0 0
        %958 = vmatmul.mubr.bf16.gmra.mrb[0].mxu0 %v860
        %v959 = vpop.f32.mrb[0].mxu0
        %v960 = vadd.f32 0.0, %v959
        %v961 = vpop.f32.mrb[0].mxu0
        %v962 = vadd.f32 0.0, %v961
        %v963 = vpop.f32.mrb[0].mxu0
        %v964 = vadd.f32 0.0, %v963
        %v965 = vpop.f32.mrb[0].mxu0
        %v966 = vadd.f32 0.0, %v965
        %967 = vmatprep.mubr.bf16.mxu0 0
        %968 = vmatmul.mubr.bf16.gmra.mrb[0].mxu0 %v863
        %v969 = vpop.f32.mrb[0].mxu0
        %v970 = vadd.f32 0.0, %v969
        %v971 = vpop.f32.mrb[0].mxu0
        %v972 = vadd.f32 0.0, %v971
        %v973 = vpop.f32.mrb[0].mxu0
        %v974 = vadd.f32 0.0, %v973
        %v975 = vpop.f32.mrb[0].mxu0
        %v976 = vadd.f32 0.0, %v975
        %977 = vmatprep.mubr.bf16.mxu0 0
        %978 = vmatmul.mubr.bf16.gmra.mrb[0].mxu0 %v866
        %v979 = vpop.f32.mrb[0].mxu0
        %v980 = vadd.f32 0.0, %v979
        %v981 = vpop.f32.mrb[0].mxu0
        %v982 = vadd.f32 0.0, %v981
        %v983 = vpop.f32.mrb[0].mxu0
        %v984 = vadd.f32 0.0, %v983
        %v985 = vpop.f32.mrb[0].mxu0
        %v986 = vadd.f32 0.0, %v985
        %987 = vdwg.mxu0
        %v988 = vmul.f32 %v910, %v802
        %v989 = vmul.f32 %v912, %v803
        %v990 = vmul.f32 %v914, %v804
        %v991 = vmul.f32 %v916, %v805
        %v992 = vmul.f32 %v920, %v806
        %v993 = vmul.f32 %v922, %v807
        %v994 = vmul.f32 %v924, %v808
        %v995 = vmul.f32 %v926, %v809
        %v996 = vmul.f32 %v930, %v810
        %v997 = vmul.f32 %v932, %v811
        %v998 = vmul.f32 %v934, %v812
        %v999 = vmul.f32 %v936, %v813
        %v1000 = vmul.f32 %v940, %v814
        %v1001 = vmul.f32 %v942, %v815
        %v1002 = vmul.f32 %v944, %v816
        %v1003 = vmul.f32 %v946, %v817
        %v1004 = vmul.f32 %v950, %v818
        %v1005 = vmul.f32 %v952, %v819
        %v1006 = vmul.f32 %v954, %v820
        %v1007 = vmul.f32 %v956, %v821
        %v1008 = vmul.f32 %v960, %v822
        %v1009 = vmul.f32 %v962, %v823
        %v1010 = vmul.f32 %v964, %v824
        %v1011 = vmul.f32 %v966, %v825
        %v1012 = vmul.f32 %v970, %v826
        %v1013 = vmul.f32 %v972, %v827
        %v1014 = vmul.f32 %v974, %v828
        %v1015 = vmul.f32 %v976, %v829
        %v1016 = vmul.f32 %v980, %v830
        %v1017 = vmul.f32 %v982, %v831
        %v1018 = vmul.f32 %v984, %v832
        %v1019 = vmul.f32 %v986, %v833
        %v1020 = vpack.c.bf16 %v990, %v988
        %v1021 = vpack.c.bf16 %v991, %v989
        %v1022 = vpack.c.bf16 %v994, %v992
        %v1023 = vpack.c.bf16 %v995, %v993
        %v1024 = vpack.c.bf16 %v998, %v996
        %v1025 = vpack.c.bf16 %v999, %v997
        %v1026 = vpack.c.bf16 %v1002, %v1000
        %v1027 = vpack.c.bf16 %v1003, %v1001
        %v1028 = vpack.c.bf16 %v1006, %v1004
        %v1029 = vpack.c.bf16 %v1007, %v1005
        %v1030 = vpack.c.bf16 %v1010, %v1008
        %v1031 = vpack.c.bf16 %v1011, %v1009
        %v1032 = vpack.c.bf16 %v1014, %v1012
        %v1033 = vpack.c.bf16 %v1015, %v1013
        %v1034 = vpack.c.bf16 %v1018, %v1016
        %v1035 = vpack.c.bf16 %v1019, %v1017
        %v1036 = vld [vmem:[%s4] sm:$0xf]
        %v1037 = vld [vmem:[%s4 + $0x4] sm:$0xf]
        %v1038 = vld [vmem:[%s4 + $0x8] sm:$0xf]
        %v1039 = vld [vmem:[%s4 + $0xc] sm:$0xf]
        %v1040 = vld [vmem:[%s4 + $0x10] sm:$0xf]
        %v1041 = vld [vmem:[%s4 + $0x14] sm:$0xf]
        %v1042 = vld [vmem:[%s4 + $0x18] sm:$0xf]
        %v1043 = vld [vmem:[%s4 + $0x1c] sm:$0xf]
        %v1044 = vld [vmem:[%s4 + $0x20] sm:$0xf]
        %v1045 = vld [vmem:[%s4 + $0x24] sm:$0xf]
        %v1046 = vld [vmem:[%s4 + $0x28] sm:$0xf]
        %v1047 = vld [vmem:[%s4 + $0x2c] sm:$0xf]
        %v1048 = vld [vmem:[%s4 + $0x30] sm:$0xf]
        %v1049 = vld [vmem:[%s4 + $0x34] sm:$0xf]
        %v1050 = vld [vmem:[%s4 + $0x38] sm:$0xf]
        %v1051 = vld [vmem:[%s4 + $0x3c] sm:$0xf]
        %v1052 = vld [vmem:[%s4 + $0x40] sm:$0xf]
        %v1053 = vld [vmem:[%s4 + $0x44] sm:$0xf]
        %v1054 = vld [vmem:[%s4 + $0x48] sm:$0xf]
        %v1055 = vld [vmem:[%s4 + $0x4c] sm:$0xf]
        %v1056 = vld [vmem:[%s4 + $0x50] sm:$0xf]
        %v1057 = vld [vmem:[%s4 + $0x54] sm:$0xf]
        %v1058 = vld [vmem:[%s4 + $0x58] sm:$0xf]
        %v1059 = vld [vmem:[%s4 + $0x5c] sm:$0xf]
        %v1060 = vld [vmem:[%s4 + $0x60] sm:$0xf]
        %v1061 = vld [vmem:[%s4 + $0x64] sm:$0xf]
        %v1062 = vld [vmem:[%s4 + $0x68] sm:$0xf]
        %v1063 = vld [vmem:[%s4 + $0x6c] sm:$0xf]
        %v1064 = vld [vmem:[%s4 + $0x70] sm:$0xf]
        %v1065 = vld [vmem:[%s4 + $0x74] sm:$0xf]
        %v1066 = vld [vmem:[%s4 + $0x78] sm:$0xf]
        %v1067 = vld [vmem:[%s4 + $0x7c] sm:$0xf]
        %v1068 = vld [vmem:[%s5] sm:$0x3]
        %v1070 = vsel %vm868, %v1068, 0
        %1072 = vmatprep.subr.bf16.mxu0 0
        %1073 = vmatpush1.bf16.msra.mxu0 %v1070
        %1074 = vmatprep.subr.bf16.mxu0 0
        %1075 = vmatpush1.bf16.msra.mxu0 0
        %1076 = vmatprep.subr.bf16.mxu0 0
        %1077 = vmatpush1.bf16.msra.mxu0 0
        %1078 = vmatprep.subr.bf16.mxu0 0
        %1079 = vmatpush1.bf16.msra.mxu0 0
        %1080 = vmatprep.subr.bf16.mxu0 0
        %1081 = vmatpush1.bf16.msra.mxu0 0
        %1082 = vmatprep.subr.bf16.mxu0 0
        %1083 = vmatpush1.bf16.msra.mxu0 0
        %1084 = vmatprep.subr.bf16.mxu0 0
        %1085 = vmatpush1.bf16.msra.mxu0 0
        %1086 = vmatprep.subr.bf16.mxu0 0
        %1087 = vmatpush1.bf16.msra.mxu0 0
        %1088 = vmatprep.subr.bf16.mxu0 0
        %1089 = vmatpush1.bf16.msra.mxu0 0
        %1090 = vmatprep.subr.bf16.mxu0 0
        %1091 = vmatpush1.bf16.msra.mxu0 0
        %1092 = vmatprep.subr.bf16.mxu0 0
        %1093 = vmatpush1.bf16.msra.mxu0 0
        %1094 = vmatprep.subr.bf16.mxu0 0
        %1095 = vmatpush1.bf16.msra.mxu0 0
        %1096 = vmatprep.subr.bf16.mxu0 0
        %1097 = vmatpush1.bf16.msra.mxu0 0
        %1098 = vmatprep.subr.bf16.mxu0 0
        %1099 = vmatpush1.bf16.msra.mxu0 0
        %1100 = vmatprep.subr.bf16.mxu0 0
        %1101 = vmatpush1.bf16.msra.mxu0 0
        %1102 = vmatprep.subr.bf16.mxu0 0
        %1103 = vmatpush1.bf16.msra.mxu0 0
        %1104 = vmatprep.mubr.bf16.mxu0 0
        %1105 = vmatmul.mubr.bf16.gmra.mrb[0].mxu0 %v845
        %v1106 = vpop.f32.mrb[0].mxu0
        %v1107 = vadd.f32 0.0, %v1106
        %v1108 = vpop.f32.mrb[0].mxu0
        %v1109 = vpop.f32.mrb[0].mxu0
        %v1110 = vadd.f32 0.0, %v1109
        %v1111 = vpop.f32.mrb[0].mxu0
        %1112 = vmatprep.mubr.bf16.mxu0 0
        %1113 = vmatmul.mubr.bf16.gmra.mrb[0].mxu0 %v848
        %v1114 = vpop.f32.mrb[0].mxu0
        %v1115 = vadd.f32 0.0, %v1114
        %v1116 = vpop.f32.mrb[0].mxu0
        %v1117 = vpop.f32.mrb[0].mxu0
        %v1118 = vadd.f32 0.0, %v1117
        %v1119 = vpop.f32.mrb[0].mxu0
        %1120 = vmatprep.mubr.bf16.mxu0 0
        %1121 = vmatmul.mubr.bf16.gmra.mrb[0].mxu0 %v851
        %v1122 = vpop.f32.mrb[0].mxu0
        %v1123 = vadd.f32 0.0, %v1122
        %v1124 = vpop.f32.mrb[0].mxu0
        %v1125 = vpop.f32.mrb[0].mxu0
        %v1126 = vadd.f32 0.0, %v1125
        %v1127 = vpop.f32.mrb[0].mxu0
        %1128 = vmatprep.mubr.bf16.mxu0 0
        %1129 = vmatmul.mubr.bf16.gmra.mrb[0].mxu0 %v854
        %v1130 = vpop.f32.mrb[0].mxu0
        %v1131 = vadd.f32 0.0, %v1130
        %v1132 = vpop.f32.mrb[0].mxu0
        %v1133 = vpop.f32.mrb[0].mxu0
        %v1134 = vadd.f32 0.0, %v1133
        %v1135 = vpop.f32.mrb[0].mxu0
        %1136 = vmatprep.mubr.bf16.mxu0 0
        %1137 = vmatmul.mubr.bf16.gmra.mrb[0].mxu0 %v857
        %v1138 = vpop.f32.mrb[0].mxu0
        %v1139 = vadd.f32 0.0, %v1138
        %v1140 = vpop.f32.mrb[0].mxu0
        %v1141 = vpop.f32.mrb[0].mxu0
        %v1142 = vadd.f32 0.0, %v1141
        %v1143 = vpop.f32.mrb[0].mxu0
        %1144 = vmatprep.mubr.bf16.mxu0 0
        %1145 = vmatmul.mubr.bf16.gmra.mrb[0].mxu0 %v860
        %v1146 = vpop.f32.mrb[0].mxu0
        %v1147 = vadd.f32 0.0, %v1146
        %v1148 = vpop.f32.mrb[0].mxu0
        %v1149 = vpop.f32.mrb[0].mxu0
        %v1150 = vadd.f32 0.0, %v1149
        %v1151 = vpop.f32.mrb[0].mxu0
        %1152 = vmatprep.mubr.bf16.mxu0 0
        %1153 = vmatmul.mubr.bf16.gmra.mrb[0].mxu0 %v863
        %v1154 = vpop.f32.mrb[0].mxu0
        %v1155 = vadd.f32 0.0, %v1154
        %v1156 = vpop.f32.mrb[0].mxu0
        %v1157 = vpop.f32.mrb[0].mxu0
        %v1158 = vadd.f32 0.0, %v1157
        %v1159 = vpop.f32.mrb[0].mxu0
        %1160 = vmatprep.mubr.bf16.mxu0 0
        %1161 = vmatmul.mubr.bf16.gmra.mrb[0].mxu0 %v866
        %v1162 = vpop.f32.mrb[0].mxu0
        %v1163 = vadd.f32 0.0, %v1162
        %v1164 = vpop.f32.mrb[0].mxu0
        %v1165 = vpop.f32.mrb[0].mxu0
        %v1166 = vadd.f32 0.0, %v1165
        %v1167 = vpop.f32.mrb[0].mxu0
        %1168 = vdwg.mxu0
        %v1201 = vunpack.c.l.b16 %v1036
        %v1202 = vunpack.c.l.b16 %v1037
        %v1203 = vunpack.c.l.b16 %v1038
        %v1204 = vunpack.c.l.b16 %v1039
        %v1205 = vunpack.c.l.b16 %v1040
        %v1206 = vunpack.c.l.b16 %v1041
        %v1207 = vunpack.c.l.b16 %v1042
        %v1208 = vunpack.c.l.b16 %v1043
        %v1209 = vunpack.c.l.b16 %v1044
        %v1210 = vunpack.c.l.b16 %v1045
        %v1211 = vunpack.c.l.b16 %v1046
        %v1212 = vunpack.c.l.b16 %v1047
        %v1213 = vunpack.c.l.b16 %v1048
        %v1214 = vunpack.c.l.b16 %v1049
        %v1215 = vunpack.c.l.b16 %v1050
        %v1216 = vunpack.c.l.b16 %v1051
        %v1217 = vunpack.c.l.b16 %v1052
        %v1218 = vunpack.c.l.b16 %v1053
        %v1219 = vunpack.c.l.b16 %v1054
        %v1220 = vunpack.c.l.b16 %v1055
        %v1221 = vunpack.c.l.b16 %v1056
        %v1222 = vunpack.c.l.b16 %v1057
        %v1223 = vunpack.c.l.b16 %v1058
        %v1224 = vunpack.c.l.b16 %v1059
        %v1225 = vunpack.c.l.b16 %v1060
        %v1226 = vunpack.c.l.b16 %v1061
        %v1227 = vunpack.c.l.b16 %v1062
        %v1228 = vunpack.c.l.b16 %v1063
        %v1229 = vunpack.c.l.b16 %v1064
        %v1230 = vunpack.c.l.b16 %v1065
        %v1231 = vunpack.c.l.b16 %v1066
        %v1232 = vunpack.c.l.b16 %v1067
        %v1233 = vpack.c.b16 %v1202, %v1201
        %v1234 = vpack.c.b16 %v1204, %v1203
        %v1235 = vpack.c.b16 %v1206, %v1205
        %v1236 = vpack.c.b16 %v1208, %v1207
        %v1237 = vpack.c.b16 %v1210, %v1209
        %v1238 = vpack.c.b16 %v1212, %v1211
        %v1239 = vpack.c.b16 %v1214, %v1213
        %v1240 = vpack.c.b16 %v1216, %v1215
        %v1241 = vpack.c.b16 %v1218, %v1217
        %v1242 = vpack.c.b16 %v1220, %v1219
        %v1243 = vpack.c.b16 %v1222, %v1221
        %v1244 = vpack.c.b16 %v1224, %v1223
        %v1245 = vpack.c.b16 %v1226, %v1225
        %v1246 = vpack.c.b16 %v1228, %v1227
        %v1247 = vpack.c.b16 %v1230, %v1229
        %v1248 = vpack.c.b16 %v1232, %v1231
        %1265 = vmatprep.subr.bf16.mxu0 0
        %1266 = vmatpush1.bf16.msra.mxu0 %v1233
        %1267 = vmatprep.subr.bf16.mxu0 0
        %1268 = vmatpush1.bf16.msra.mxu0 %v1234
        %1269 = vmatprep.subr.bf16.mxu0 0
        %1270 = vmatpush1.bf16.msra.mxu0 %v1235
        %1271 = vmatprep.subr.bf16.mxu0 0
        %1272 = vmatpush1.bf16.msra.mxu0 %v1236
        %1273 = vmatprep.subr.bf16.mxu0 0
        %1274 = vmatpush1.bf16.msra.mxu0 %v1237
        %1275 = vmatprep.subr.bf16.mxu0 0
        %1276 = vmatpush1.bf16.msra.mxu0 %v1238
        %1277 = vmatprep.subr.bf16.mxu0 0
        %1278 = vmatpush1.bf16.msra.mxu0 %v1239
        %1279 = vmatprep.subr.bf16.mxu0 0
        %1280 = vmatpush1.bf16.msra.mxu0 %v1240
        %1281 = vmatprep.subr.bf16.mxu0 0
        %1282 = vmatpush1.bf16.msra.mxu0 %v1241
        %1283 = vmatprep.subr.bf16.mxu0 0
        %1284 = vmatpush1.bf16.msra.mxu0 %v1242
        %1285 = vmatprep.subr.bf16.mxu0 0
        %1286 = vmatpush1.bf16.msra.mxu0 %v1243
        %1287 = vmatprep.subr.bf16.mxu0 0
        %1288 = vmatpush1.bf16.msra.mxu0 %v1244
        %1289 = vmatprep.subr.bf16.mxu0 0
        %1290 = vmatpush1.bf16.msra.mxu0 %v1245
        %1291 = vmatprep.subr.bf16.mxu0 0
        %1292 = vmatpush1.bf16.msra.mxu0 %v1246
        %1293 = vmatprep.subr.bf16.mxu0 0
        %1294 = vmatpush1.bf16.msra.mxu0 %v1247
        %1295 = vmatprep.subr.bf16.mxu0 0
        %1296 = vmatpush1.bf16.msra.mxu0 %v1248
        %1297 = vmatprep.mubr.bf16.mxu0 %v1021
        %1298 = vmatmul.mubr.bf16.gmra.mrb[0].mxu0 %v1020
        %v1299 = vpop.f32.mrb[0].mxu0
        %v1300 = vadd.f32 %v1107, %v1299
        %v1301 = vpop.f32.mrb[0].mxu0
        %v1302 = vpop.f32.mrb[0].mxu0
        %v1303 = vadd.f32 %v1110, %v1302
        %v1304 = vpop.f32.mrb[0].mxu0
        %1305 = vmatprep.mubr.bf16.mxu0 %v1023
        %1306 = vmatmul.mubr.bf16.gmra.mrb[0].mxu0 %v1022
        %v1307 = vpop.f32.mrb[0].mxu0
        %v1308 = vadd.f32 %v1115, %v1307
        %v1309 = vpop.f32.mrb[0].mxu0
        %v1310 = vpop.f32.mrb[0].mxu0
        %v1311 = vadd.f32 %v1118, %v1310
        %v1312 = vpop.f32.mrb[0].mxu0
        %1313 = vmatprep.mubr.bf16.mxu0 %v1025
        %1314 = vmatmul.mubr.bf16.gmra.mrb[0].mxu0 %v1024
        %v1315 = vpop.f32.mrb[0].mxu0
        %v1316 = vadd.f32 %v1123, %v1315
        %v1317 = vpop.f32.mrb[0].mxu0
        %v1318 = vpop.f32.mrb[0].mxu0
        %v1319 = vadd.f32 %v1126, %v1318
        %v1320 = vpop.f32.mrb[0].mxu0
        %1321 = vmatprep.mubr.bf16.mxu0 %v1027
        %1322 = vmatmul.mubr.bf16.gmra.mrb[0].mxu0 %v1026
        %v1323 = vpop.f32.mrb[0].mxu0
        %v1324 = vadd.f32 %v1131, %v1323
        %v1325 = vpop.f32.mrb[0].mxu0
        %v1326 = vpop.f32.mrb[0].mxu0
        %v1327 = vadd.f32 %v1134, %v1326
        %v1328 = vpop.f32.mrb[0].mxu0
        %1329 = vmatprep.mubr.bf16.mxu0 %v1029
        %1330 = vmatmul.mubr.bf16.gmra.mrb[0].mxu0 %v1028
        %v1331 = vpop.f32.mrb[0].mxu0
        %v1332 = vadd.f32 %v1139, %v1331
        %v1333 = vpop.f32.mrb[0].mxu0
        %v1334 = vpop.f32.mrb[0].mxu0
        %v1335 = vadd.f32 %v1142, %v1334
        %v1336 = vpop.f32.mrb[0].mxu0
        %1337 = vmatprep.mubr.bf16.mxu0 %v1031
        %1338 = vmatmul.mubr.bf16.gmra.mrb[0].mxu0 %v1030
        %v1339 = vpop.f32.mrb[0].mxu0
        %v1340 = vadd.f32 %v1147, %v1339
        %v1341 = vpop.f32.mrb[0].mxu0
        %v1342 = vpop.f32.mrb[0].mxu0
        %v1343 = vadd.f32 %v1150, %v1342
        %v1344 = vpop.f32.mrb[0].mxu0
        %1345 = vmatprep.mubr.bf16.mxu0 %v1033
        %1346 = vmatmul.mubr.bf16.gmra.mrb[0].mxu0 %v1032
        %v1347 = vpop.f32.mrb[0].mxu0
        %v1348 = vadd.f32 %v1155, %v1347
        %v1349 = vpop.f32.mrb[0].mxu0
        %v1350 = vpop.f32.mrb[0].mxu0
        %v1351 = vadd.f32 %v1158, %v1350
        %v1352 = vpop.f32.mrb[0].mxu0
        %1353 = vmatprep.mubr.bf16.mxu0 %v1035
        %1354 = vmatmul.mubr.bf16.gmra.mrb[0].mxu0 %v1034
        %v1355 = vpop.f32.mrb[0].mxu0
        %v1356 = vadd.f32 %v1163, %v1355
        %v1357 = vpop.f32.mrb[0].mxu0
        %v1358 = vpop.f32.mrb[0].mxu0
        %v1359 = vadd.f32 %v1166, %v1358
        %v1360 = vpop.f32.mrb[0].mxu0
        %1361 = vdwg.mxu0
        %1362 = vst [vmem:[%s260] sm:$0xff] %v1300
        %1363 = vst [vmem:[%s260 + $0x8] sm:$0xff] %v1303
        %1364 = vst [vmem:[%s260 + $0x10] sm:$0xff] %v1308
        %1365 = vst [vmem:[%s260 + $0x18] sm:$0xff] %v1311
        %1366 = vst [vmem:[%s260 + $0x20] sm:$0xff] %v1316
        %1367 = vst [vmem:[%s260 + $0x28] sm:$0xff] %v1319
        %1368 = vst [vmem:[%s260 + $0x30] sm:$0xff] %v1324
        %1369 = vst [vmem:[%s260 + $0x38] sm:$0xff] %v1327
        %1370 = vst [vmem:[%s260 + $0x40] sm:$0xff] %v1332
        %1371 = vst [vmem:[%s260 + $0x48] sm:$0xff] %v1335
        %1372 = vst [vmem:[%s260 + $0x50] sm:$0xff] %v1340
        %1373 = vst [vmem:[%s260 + $0x58] sm:$0xff] %v1343
        %1374 = vst [vmem:[%s260 + $0x60] sm:$0xff] %v1348
        %1375 = vst [vmem:[%s260 + $0x68] sm:$0xff] %v1351
        %1376 = vst [vmem:[%s260 + $0x70] sm:$0xff] %v1356
        %1377 = vst [vmem:[%s260 + $0x78] sm:$0xff] %v1359
        %s1378 = sand.u32 %s160, 1
        %s1379 = scalar_lea.sflag [#allocation4], %s1378
        %s1380 = sand.u32 %s160, 1
        %s1381 = smul.addr %s1380, 128
        %s1382 = scalar_lea.vmem [#allocation5], %s1381
        // Predicated region
        $region49: #{tpu_custom_call.1} parent=43 // pred_check
          %p1383 = pneg %p170
        $region50: #{tpu_custom_call.1} parent=43 // pred_check_branch
          %1385 = sbr.rel (%p1383) target = $region52
        $region51: #{tpu_custom_call.1} parent=43 // pred_region
          %s1386 = smul.u32 16, %s21
          %s1388 = ssub.s32 2048, 2048
          %1389 = vsyncadd %s1379, %s1388
          %s1390 = smul.addr %s1386, 128
          %s1391 = scalar_lea.hbm %s6, %s1390
          %s1392 = sshll.u32 %s1382, 4
          %s1393 = int_to_ptr.vmem [resolvable:$true] %s1392
          %1398 = dma.vmem_to_hbm [thread:$0]  %s1393, 2048, %s1391, %s1379, 128, 128, 8
        $region52: #{tpu_custom_call.1} parent=43 // pred_fallthru
          _
      $region44: #{tpu_custom_call.1} parent=5 // pred_fallthru
        _
      %p1399 = scmp.le.s32.totalorder 2, %s16
      // Predicated region
      $region53: #{tpu_custom_call.1} parent=5 // pred_check
        %p1400 = pneg %p1399
      $region54: #{tpu_custom_call.1} parent=5 // pred_check_branch
        %1402 = sbr.rel (%p1400) target = $region56
      $region55: #{tpu_custom_call.1} parent=5 // pred_region
        %s1403 = ssub.s32 %s16, 2
        // Predicated region
        $region57: #{tpu_custom_call.1} parent=55 // pred_check
          %p1404 = pneg %p176
        $region58: #{tpu_custom_call.1} parent=55 // pred_check_branch
          %1406 = sbr.rel (%p1404) target = $region60
        $region59: #{tpu_custom_call.1} parent=55 // pred_region
          %s1407 = sand.u32 %s161, 1
          %s1408 = scalar_lea.sflag [#allocation4], %s1407
          %s1409 = sand.u32 %s161, 1
          %s1410 = smul.addr %s1409, 128
          %s1411 = scalar_lea.vmem [#allocation5], %s1410
          %1412 = dma.done %s1408, 2048
        $region60: #{tpu_custom_call.1} parent=55 // pred_fallthru
          _
      $region56: #{tpu_custom_call.1} parent=5 // pred_fallthru
        _
    $region6: #{tpu_custom_call.1} parent=1 // loop_footer
      %s20 = sadd.s32 1, %s16
    $region7: #{tpu_custom_call.1} parent=1 // loop_footer_branch
      %15 = sbr.rel target = $region3
    $region8: #{tpu_custom_call.1} parent=1 // loop_exit
      _
    %1413 = vsyncpa [#allocation3], 1
    %s1414 = scalar_lea.sflag [#allocation3], 1
    %1415 = vsyncpa %s1414, 1
    %1416 = vsyncpa [#allocation4], 1
    %s1417 = scalar_lea.sflag [#allocation4], 1
    %1418 = vsyncpa %s1417, 1

</llo_original>
